<compile_context>
chip_gen: v7x
topology: tpu7x:2x2x1
jax: 0.10.0
libtpu: 0.0.40
codegen_flags: <defaults>
</compile_context>

<pallas_src>
import functools

import jax
import jax.numpy as jnp
from jax.experimental import pallas as pl
from jax.experimental.pallas import tpu as pltpu


# ----------------------------- Pallas kernels ------------------------------

def _feat_kernel(x_ref, w_ref, asrc_t_ref, adst_ref, h_ref, adst_out_ref, asrc_t_out_ref):
    """Per-node precompute: h = x @ W, alpha_dst = h @ Adst_bd, alpha_src^T = Asrc_bd^T @ h^T."""
    h = jnp.dot(x_ref[...], w_ref[...], preferred_element_type=jnp.float32)   # [T, H*C] f32
    h_bf = h.astype(jnp.bfloat16)
    h_ref[...] = h_bf
    # alpha_dst[t, h] = sum_c att_dst[h, c] * h[t, h*C + c]   (block-diagonal matmul)
    adst_out_ref[...] = jnp.dot(h_bf, adst_ref[...], preferred_element_type=jnp.float32)
    # alpha_src^T[h, t]; contraction of both last dims -> no explicit transpose needed.
    asrc_t_out_ref[...] = jnp.einsum("hc,tc->ht", asrc_t_ref[...], h_bf,
                                     preferred_element_type=jnp.float32)


def _gat_attn_kernel(h_ref, asrct_ref, adst_ref, bias_ref, scale_ref, shift_ref,
                     adj_ref, o_ref, *, heads, channels):
    """Per dst-row tile: masked-softmax attention, attn @ h, bias, ReLU, folded BN."""
    # Additive mask bias, computed ONCE per tile and shared by every head:
    #   edge -> 0.0, non-edge -> -1e30  (self-loops guarantee every row stays valid).
    neg = (adj_ref[...].astype(jnp.float32) - 1.0) * 1e30                     # [T, N]
    h_all = h_ref[...]                                                        # [N, H*C] bf16
    asrct = asrct_ref[...]                                                    # [H, N]  f32
    adst = adst_ref[...]                                                      # [T, H]  f32
    bias = bias_ref[...]
    scale = scale_ref[...]
    shift = shift_ref[...]

    for hd in range(heads):                                                   # tiny static count
        lo, hi = hd * channels, (hd + 1) * channels
        logits = adst[:, hd:hd + 1] + asrct[hd:hd + 1, :]                     # [T, N]
        logits = jnp.maximum(logits, 0.2 * logits)                            # LeakyReLU(0.2)
        masked = logits + neg
        m = jnp.max(masked, axis=-1, keepdims=True)
        # TODO(synk): on v6e/v7x the exp could run in bf16 on the EUP; kept f32 for
        # portability to v5e (no bf16 EUP) and to keep masked entries underflowing cleanly.
        p = jnp.exp(masked - m)
        attn = (p * pl.reciprocal(jnp.sum(p, axis=-1, keepdims=True),
                                  approx=True)).astype(jnp.bfloat16)
        agg = jnp.dot(attn, h_all[:, lo:hi], preferred_element_type=jnp.float32)   # [T, C]
        y = jnp.maximum(agg + bias[:, lo:hi], 0.0)                            # dropout(eval)=id -> ReLU
        o_ref[:, lo:hi] = (y * scale[:, lo:hi] + shift[:, lo:hi]).astype(o_ref.dtype)


def _pool_mlp_kernel(pool_ref, h_ref, w1_ref, b1_ref, w2_ref, b2_ref, o_ref, acc_ref):
    """global_mean_pool (tiled over nodes, accumulated) -> lin1 -> ReLU -> lin2 -> sigmoid."""
    k = pl.program_id(0)

    @pl.when(k == 0)
    def _():
        acc_ref[...] = jnp.zeros_like(acc_ref)

    acc_ref[...] += jnp.dot(pool_ref[...], h_ref[...], preferred_element_type=jnp.float32)

    @pl.when(k == pl.num_programs(0) - 1)
    def _():
        g = acc_ref[...].astype(jnp.bfloat16)
        a = jnp.dot(g, w1_ref[...], preferred_element_type=jnp.float32) + b1_ref[...]
        a = jnp.maximum(a, 0.0).astype(jnp.bfloat16)                          # lin1 -> relu
        y = jnp.dot(a, w2_ref[...], preferred_element_type=jnp.float32) + b2_ref[...]
        z = jnp.exp(-jnp.abs(y))                                              # stable sigmoid
        o_ref[...] = jnp.where(y >= 0.0, 1.0 / (1.0 + z), z / (1.0 + z))


# ------------------------------ wrappers ------------------------------------

def _round_up(v, m):
    return ((v + m - 1) // m) * m


def _choose_tile(n):
    if n <= 512:
        return _round_up(max(n, 8), 8)           # single dst tile for small graphs
    try:
        vmem = pltpu.get_tpu_info().vmem_capacity_bytes
    except Exception:
        vmem = 128 * 1024 * 1024
    # v7x has only 64 MiB VMEM per TensorCore -> smaller dst tiles; v5e/v6e have 128 MiB.
    return 128 if vmem <= 64 * 1024 * 1024 else 256


def _vmem_limit_bytes(n, tile, hc, heads):
    resident = n * hc * 2 + heads * n * 4                    # h (bf16) + alpha_src^T (f32)
    per_tile = 2 * tile * n                                  # double-buffered int8 adjacency
    per_tile += 2 * tile * heads * 4 + 2 * tile * hc * 2     # alpha_dst tiles + output tiles
    temps = 6 * tile * n * 4                                 # in-flight f32 [T, N] temporaries
    est = (resident + per_tile + temps) * 3 // 2
    return int(min(max(est, 32 * 1024 * 1024), 64 * 1024 * 1024))


def _att_blockdiag(att, heads, channels):
    """[H*C] attention vector -> block-diagonal [H*C, H] matrix (column h = head h's vector)."""
    a = att.reshape(heads, channels).astype(jnp.float32)
    eye = jnp.eye(heads, dtype=jnp.float32)
    return (eye[:, None, :] * a[:, :, None]).reshape(heads * channels, heads)


def gat_relu_bn_layer(x_bf, w, att_src, att_dst, bias, bn_scale, bn_shift, adj,
                      heads, channels, tile):
    """PyG GATConv (concat=True, add_self_loops=True, slope=0.2, dropout=0) + ReLU + BN(eval)."""
    n, f = x_bf.shape
    hc = heads * channels
    assert n % tile == 0
    n_tiles = n // tile
    row = lambda v: v.reshape(1, hc).astype(jnp.float32)

    w_bf = w.astype(jnp.bfloat16)
    a_dst_bd = _att_blockdiag(att_dst, heads, channels).astype(jnp.bfloat16)       # [H*C, H]
    a_src_bd_t = _att_blockdiag(att_src, heads, channels).T.astype(jnp.bfloat16)   # [H, H*C]

    # Stage 1: feature transform + per-node attention coefficients (once per node).
    h_bf, alpha_dst, alpha_src_t = pl.pallas_call(
        _feat_kernel,
        out_shape=(jax.ShapeDtypeStruct((n, hc), jnp.bfloat16),
                   jax.ShapeDtypeStruct((n, heads), jnp.float32),
                   jax.ShapeDtypeStruct((heads, n), jnp.float32)),
        grid=(n_tiles,),
        in_specs=[
            pl.BlockSpec((tile, f), lambda i: (i, 0)),       # x rows (bf16)
            pl.BlockSpec((f, hc), lambda i: (0, 0)),         # W (bf16)
            pl.BlockSpec((heads, hc), lambda i: (0, 0)),     # att_src block-diag^T
            pl.BlockSpec((hc, heads), lambda i: (0, 0)),     # att_dst block-diag
        ],
        out_specs=(pl.BlockSpec((tile, hc), lambda i: (i, 0)),
                   pl.BlockSpec((tile, heads), lambda i: (i, 0)),
                   pl.BlockSpec((heads, tile), lambda i: (0, i))),
        compiler_params=pltpu.CompilerParams(dimension_semantics=("parallel",)),
    )(x_bf, w_bf, a_src_bd_t, a_dst_bd)

    # Stage 2: per-dst-tile attention softmax + aggregation + bias + ReLU + folded BN.
    kernel = functools.partial(_gat_attn_kernel, heads=heads, channels=channels)
    return pl.pallas_call(
        kernel,
        out_shape=jax.ShapeDtypeStruct((n, hc), jnp.bfloat16),
        grid=(n_tiles,),
        in_specs=[
            pl.BlockSpec((n, hc), lambda i: (0, 0)),         # h for all source nodes (resident)
            pl.BlockSpec((heads, n), lambda i: (0, 0)),      # alpha_src^T (resident, lane-dense)
            pl.BlockSpec((tile, heads), lambda i: (i, 0)),   # alpha_dst for this dst tile
            pl.BlockSpec((1, hc), lambda i: (0, 0)),         # conv bias (post-concat)
            pl.BlockSpec((1, hc), lambda i: (0, 0)),         # folded BN scale
            pl.BlockSpec((1, hc), lambda i: (0, 0)),         # folded BN shift
            pl.BlockSpec((tile, n), lambda i: (i, 0)),       # int8 adjacency dst-row tile
        ],
        out_specs=pl.BlockSpec((tile, hc), lambda i: (i, 0)),
        compiler_params=pltpu.CompilerParams(
            dimension_semantics=("parallel",),               # v7x: shard dst tiles over TCs
            vmem_limit_bytes=_vmem_limit_bytes(n, tile, hc, heads)),
    )(h_bf, alpha_src_t, alpha_dst, row(bias), row(bn_scale), row(bn_shift), adj)


def pool_mlp_head(h, pool, w1, b1, w2, b2, tile):
    g, n = pool.shape
    hc = h.shape[1]
    d1 = w1.shape[1]
    assert n % tile == 0
    n_tiles = n // tile
    return pl.pallas_call(
        _pool_mlp_kernel,
        out_shape=jax.ShapeDtypeStruct((g, 1), jnp.float32),
        grid=(n_tiles,),
        in_specs=[
            pl.BlockSpec((g, tile), lambda k: (0, k)),       # mean-pool matrix tile (bf16)
            pl.BlockSpec((tile, hc), lambda k: (k, 0)),      # node features tile (bf16)
            pl.BlockSpec((hc, d1), lambda k: (0, 0)),        # lin1 W
            pl.BlockSpec((1, d1), lambda k: (0, 0)),         # lin1 b
            pl.BlockSpec((d1, 1), lambda k: (0, 0)),         # lin2 W
            pl.BlockSpec((1, 1), lambda k: (0, 0)),          # lin2 b
        ],
        out_specs=pl.BlockSpec((g, 1), lambda k: (0, 0)),
        scratch_shapes=[pltpu.VMEM((g, hc), jnp.float32)],
        compiler_params=pltpu.CompilerParams(dimension_semantics=("arbitrary",)),
    )(pool.astype(jnp.bfloat16), h,
      w1.astype(jnp.bfloat16), b1.reshape(1, -1).astype(jnp.float32),
      w2.astype(jnp.bfloat16), b2.reshape(1, -1).astype(jnp.float32))


# ------------------------------ model glue ---------------------------------

def _fold_batchnorm(gamma, beta, mean, var, eps=1e-5):
    scale = gamma / jnp.sqrt(var + eps)
    return scale, beta - mean * scale


def init_params(key, cfg):
    F = cfg["num_node_features"]
    H1, C1 = cfg["heads1"], cfg["hidden1"]
    H2, C2 = cfg["heads2"], cfg["hidden2"]
    D1 = cfg["dense1"]
    ks = jax.random.split(key, 16)
    nrm = lambda k, s, scale=0.1: scale * jax.random.normal(k, s, jnp.float32)
    p = {
        "conv1_w": nrm(ks[0], (F, H1 * C1), 0.2),
        "conv1_att_src": nrm(ks[1], (H1 * C1,), 0.2),
        "conv1_att_dst": nrm(ks[2], (H1 * C1,), 0.2),
        "conv1_bias": nrm(ks[3], (H1 * C1,)),
        "bn1_gamma": 1.0 + nrm(ks[4], (H1 * C1,)),
        "bn1_beta": nrm(ks[5], (H1 * C1,)),
        "bn1_mean": nrm(ks[6], (H1 * C1,)),
        "bn1_var": 1.0 + jnp.abs(nrm(ks[7], (H1 * C1,))),
        "conv2_w": nrm(ks[8], (H1 * C1, H2 * C2), 0.2),
        "conv2_att_src": nrm(ks[9], (H2 * C2,), 0.2),
        "conv2_att_dst": nrm(ks[10], (H2 * C2,), 0.2),
        "conv2_bias": nrm(ks[11], (H2 * C2,)),
        "bn2_gamma": 1.0 + nrm(ks[12], (H2 * C2,)),
        "bn2_beta": nrm(ks[13], (H2 * C2,)),
        "bn2_mean": nrm(ks[14], (H2 * C2,)),
        "bn2_var": 1.0 + jnp.abs(nrm(ks[15], (H2 * C2,))),
    }
    ks2 = jax.random.split(jax.random.fold_in(key, 1), 4)
    p["lin1_w"] = nrm(ks2[0], (H2 * C2, D1), 0.2)
    p["lin1_b"] = nrm(ks2[1], (D1,))
    p["lin2_w"] = nrm(ks2[2], (D1, 1), 0.2)
    p["lin2_b"] = nrm(ks2[3], (1,))
    return p


def model_forward(params, x, edge_index, batch, num_graphs, cfg):
    n, f = x.shape
    tile = _choose_tile(n)
    n_pad = _round_up(n, tile)

    # Padded node features in bf16 (zero rows for padding).
    x_p = jnp.zeros((n_pad, f), jnp.bfloat16).at[:n].set(x.astype(jnp.bfloat16))

    # Dense int8 adjacency mask adj[dst, src] with self loops (GATConv add_self_loops=True);
    # padded rows also get a self loop so every softmax row has >= 1 valid entry.
    # TODO(synk): replace the dense O(N^2) mask with CSR/neighbor-list tiles driven by
    # PrefetchScalarGridSpec for realistically sparse graphs.
    adj = jnp.zeros((n_pad, n_pad), jnp.int8)
    adj = adj.at[edge_index[1], edge_index[0]].set(1)
    diag = jnp.arange(n_pad)
    adj = adj.at[diag, diag].set(1)

    s1, t1 = _fold_batchnorm(params["bn1_gamma"], params["bn1_beta"],
                             params["bn1_mean"], params["bn1_var"])
    s2, t2 = _fold_batchnorm(params["bn2_gamma"], params["bn2_beta"],
                             params["bn2_mean"], params["bn2_var"])

    # conv1 -> dropoutA(identity, eval) -> relu -> bn1
    h = gat_relu_bn_layer(x_p, params["conv1_w"], params["conv1_att_src"],
                          params["conv1_att_dst"], params["conv1_bias"],
                          s1, t1, adj, cfg["heads1"], cfg["hidden1"], tile)
    # conv2 -> dropoutB(identity, eval) -> relu -> bn2
    h = gat_relu_bn_layer(h, params["conv2_w"], params["conv2_att_src"],
                          params["conv2_att_dst"], params["conv2_bias"],
                          s2, t2, adj, cfg["heads2"], cfg["hidden2"], tile)

    # Mean-pool matrix [G, N_pad]; padded nodes map to no graph.
    batch_p = jnp.full((n_pad,), -1, jnp.int32).at[:n].set(batch.astype(jnp.int32))
    onehot = (batch_p[None, :] == jnp.arange(num_graphs)[:, None]).astype(jnp.float32)
    pool = onehot / jnp.maximum(onehot.sum(axis=1, keepdims=True), 1.0)

    # pool -> lin1 -> dropoutC(identity) -> relu -> lin2 -> sigmoid
    return pool_mlp_head(h, pool, params["lin1_w"], params["lin1_b"],
                         params["lin2_w"], params["lin2_b"], tile)


# TODO(synk): training-mode dropout and BatchNorm batch-statistics paths are not
# implemented; this reproduces the eval/inference forward pass.

if __name__ == "__main__":
    cfg = dict(num_node_features=16, hidden1=8, heads1=2,
               hidden2=8, heads2=2, dense1=16)
    N, num_graphs = 8, 2

    key = jax.random.PRNGKey(0)
    kx, kp = jax.random.split(key)
    x = jax.random.normal(kx, (N, cfg["num_node_features"]), jnp.float32)

    # Two graphs of 4 nodes each, bidirectional rings.
    src = jnp.array([0, 1, 1, 2, 2, 3, 3, 0, 4, 5, 5, 6, 6, 7, 7, 4], dtype=jnp.int32)
    dst = jnp.array([1, 0, 2, 1, 3, 2, 0, 3, 5, 4, 6, 5, 7, 6, 4, 7], dtype=jnp.int32)
    edge_index = jnp.stack([src, dst])
    batch = jnp.array([0, 0, 0, 0, 1, 1, 1, 1], dtype=jnp.int32)

    params = init_params(kp, cfg)
    out = model_forward(params, x, edge_index, batch, num_graphs, cfg)
    out = jax.block_until_ready(out)

    assert out.shape == (num_graphs, 1), out.shape
    assert bool(jnp.all(jnp.isfinite(out)))
    assert bool(jnp.all((out >= 0.0) & (out <= 1.0)))   # sigmoid output range
    print("KERNEL_OK")
</pallas_src>

<mosaic_0001>
module attributes {stable_mosaic.version = 11 : i64} {
  func.func @_feat_kernel(%arg0: i32, %arg1: memref<8x16xbf16, #tpu.memory_space<vmem>>, %arg2: memref<16x16xbf16, #tpu.memory_space<vmem>>, %arg3: memref<2x16xbf16, #tpu.memory_space<vmem>>, %arg4: memref<16x2xbf16, #tpu.memory_space<vmem>>, %arg5: memref<8x16xbf16, #tpu.memory_space<vmem>>, %arg6: memref<8x2xf32, #tpu.memory_space<vmem>>, %arg7: memref<2x8xf32, #tpu.memory_space<vmem>>) attributes {dimension_semantics = [#tpu.dimension_semantics<parallel>], iteration_bounds = array<i64: 1>, scalar_prefetch = 0 : i64, scratch_operands = 0 : i64, tpu.core_type = #tpu.core_type<tc>, window_params = [{transform_indices = @transform_0, window_bounds = array<i64: 8, 16>}, {pipeline_mode = #tpu.pipeline_mode<synchronous>, transform_indices = @transform_1, window_bounds = array<i64: 16, 16>}, {pipeline_mode = #tpu.pipeline_mode<synchronous>, transform_indices = @transform_2, window_bounds = array<i64: 2, 16>}, {pipeline_mode = #tpu.pipeline_mode<synchronous>, transform_indices = @transform_3, window_bounds = array<i64: 16, 2>}, {transform_indices = @transform_4, window_bounds = array<i64: 8, 16>}, {transform_indices = @transform_5, window_bounds = array<i64: 8, 2>}, {transform_indices = @transform_6, window_bounds = array<i64: 2, 8>}]} {
    %c0 = arith.constant 0 : index
    %c0_0 = arith.constant 0 : index
    %0 = vector.load %arg1[%c0, %c0_0] : memref<8x16xbf16, #tpu.memory_space<vmem>>, vector<8x16xbf16>
    %c0_1 = arith.constant 0 : index
    %c0_2 = arith.constant 0 : index
    %1 = vector.load %arg2[%c0_1, %c0_2] : memref<16x16xbf16, #tpu.memory_space<vmem>>, vector<16x16xbf16>
    %cst = arith.constant dense<0.000000e+00> : vector<8x16xf32>
    %2 = tpu.matmul %0, %1, %cst {dimension_numbers = #tpu.dot_dimension_numbers<[1], [0], [0], [1], [0, 0, 1, 1], [], []>} : vector<8x16xbf16>, vector<16x16xbf16>, vector<8x16xf32> -> vector<8x16xf32>
    %3 = arith.truncf %2 : vector<8x16xf32> to vector<8x16xbf16>
    %c0_3 = arith.constant 0 : index
    %c0_4 = arith.constant 0 : index
    %4 = vector.load %arg5[%c0_3, %c0_4] : memref<8x16xbf16, #tpu.memory_space<vmem>>, vector<8x16xbf16>
    tpu.vector_store %arg5[%c0_3, %c0_4], %3 {strides = array<i32>} : memref<8x16xbf16, #tpu.memory_space<vmem>>, vector<8x16xbf16>,
    %c0_5 = arith.constant 0 : index
    %c0_6 = arith.constant 0 : index
    %5 = vector.load %arg4[%c0_5, %c0_6] : memref<16x2xbf16, #tpu.memory_space<vmem>>, vector<16x2xbf16>
    %cst_7 = arith.constant dense<0.000000e+00> : vector<8x2xf32>
    %6 = tpu.matmul %3, %5, %cst_7 {dimension_numbers = #tpu.dot_dimension_numbers<[1], [0], [0], [1], [0, 0, 1, 1], [], []>} : vector<8x16xbf16>, vector<16x2xbf16>, vector<8x2xf32> -> vector<8x2xf32>
    %c0_8 = arith.constant 0 : index
    %c0_9 = arith.constant 0 : index
    %7 = vector.load %arg6[%c0_8, %c0_9] : memref<8x2xf32, #tpu.memory_space<vmem>>, vector<8x2xf32>
    tpu.vector_store %arg6[%c0_8, %c0_9], %6 {strides = array<i32>} : memref<8x2xf32, #tpu.memory_space<vmem>>, vector<8x2xf32>,
    %c0_10 = arith.constant 0 : index
    %c0_11 = arith.constant 0 : index
    %8 = vector.load %arg3[%c0_10, %c0_11] : memref<2x16xbf16, #tpu.memory_space<vmem>>, vector<2x16xbf16>
    "tpu.trace_start"() <{level = 10 : i32, message = "hc,tc->ht"}> : () -> ()
    %cst_12 = arith.constant dense<0.000000e+00> : vector<2x8xf32>
    %9 = tpu.matmul %8, %3, %cst_12 {dimension_numbers = #tpu.dot_dimension_numbers<[1], [1], [0], [0], [0, 0, 1, 0], [], []>} : vector<2x16xbf16>, vector<8x16xbf16>, vector<2x8xf32> -> vector<2x8xf32>
    "tpu.trace_stop"() : () -> ()
    %c0_13 = arith.constant 0 : index
    %c0_14 = arith.constant 0 : index
    %10 = vector.load %arg7[%c0_13, %c0_14] : memref<2x8xf32, #tpu.memory_space<vmem>>, vector<2x8xf32>
    tpu.vector_store %arg7[%c0_13, %c0_14], %9 {strides = array<i32>} : memref<2x8xf32, #tpu.memory_space<vmem>>, vector<2x8xf32>,
    return
  }
  func.func @transform_0(%arg0: i32) -> (i32, i32) {
    %c0_i32 = arith.constant 0 : i32
    %c0_i32_0 = arith.constant 0 : i32
    return %arg0, %c0_i32 : i32, i32
  }
  func.func @transform_1(%arg0: i32) -> (i32, i32) {
    %c0_i32 = arith.constant 0 : i32
    %c0_i32_0 = arith.constant 0 : i32
    %c0_i32_1 = arith.constant 0 : i32
    return %c0_i32, %c0_i32_0 : i32, i32
  }
  func.func @transform_2(%arg0: i32) -> (i32, i32) {
    %c0_i32 = arith.constant 0 : i32
    %c0_i32_0 = arith.constant 0 : i32
    %c0_i32_1 = arith.constant 0 : i32
    return %c0_i32, %c0_i32_0 : i32, i32
  }
  func.func @transform_3(%arg0: i32) -> (i32, i32) {
    %c0_i32 = arith.constant 0 : i32
    %c0_i32_0 = arith.constant 0 : i32
    %c0_i32_1 = arith.constant 0 : i32
    return %c0_i32, %c0_i32_0 : i32, i32
  }
  func.func @transform_4(%arg0: i32) -> (i32, i32) {
    %c0_i32 = arith.constant 0 : i32
    %c0_i32_0 = arith.constant 0 : i32
    return %arg0, %c0_i32 : i32, i32
  }
  func.func @transform_5(%arg0: i32) -> (i32, i32) {
    %c0_i32 = arith.constant 0 : i32
    %c0_i32_0 = arith.constant 0 : i32
    return %arg0, %c0_i32 : i32, i32
  }
  func.func @transform_6(%arg0: i32) -> (i32, i32) {
    %c0_i32 = arith.constant 0 : i32
    %c0_i32_0 = arith.constant 0 : i32
    return %c0_i32, %arg0 : i32, i32
  }
}

</mosaic_0001>

<llo_original>
// kernel: tpu_custom_call.1
$region0: #{tpu_custom_call.1}
  #allocation0 [shape = 'u32[]', space=smem, size = 0x4, offset = 0x4, fixed_abs, tag = 'smem constant byte address 0x4 - core index']
  #allocation1 [shape = 'u32[144,128]{1,0:T(1,128)}', space=vmem, size = 0x12000, scoped, tag = 'internal scratch']
  %s0 = inlined_call_operand.vmem [shape: bf16[8,16], index: 0, kind: input, shape index: {}]
  %s1 = inlined_call_operand.vmem [shape: bf16[16,16], index: 1, kind: input, shape index: {}]
  %s2 = inlined_call_operand.vmem [shape: bf16[2,16], index: 2, kind: input, shape index: {}]
  %s3 = inlined_call_operand.vmem [shape: bf16[16,2], index: 3, kind: input, shape index: {}]
  %s4 = inlined_call_operand.hbm [shape: bf16[8,16], index: 4, kind: output, shape index: {0}]
  %s5 = inlined_call_operand.vmem [shape: f32[8,2], index: 5, kind: output, shape index: {1}]
  %s6 = inlined_call_operand.hbm [shape: f32[2,8], index: 6, kind: output, shape index: {2}]
  %7 = xla_tuple %s4, %s5, %s6
  %s8 = sld [smem:[#allocation0]]
  $region42: #{tpu_custom_call.1} parent=0
    _
  %s10 = ssub.s32 1, %s8
  %s11 = scalar_select 0, %s10, %s8
  $region1: #{tpu_custom_call.1} parent=0
    #allocation2 [shape = 'u8[2048]{0}', space=vmem, size = 0x800, scoped, tag = 'output window, operand 0, single buffered']
    #allocation3 [shape = 's32[1]{0}', space=sflag, size = 0x4, scoped, tag = 'scoped memory for tpu_custom_call.1']
    #allocation4 [shape = 'u8[1024]{0}', space=vmem, size = 0x400, scoped, tag = 'output window, operand 2, single buffered']
    #allocation5 [shape = 's32[1]{0}', space=sflag, size = 0x4, scoped, tag = 'scoped memory for tpu_custom_call.1']
    %12 = vsyncpa [#allocation3], 0
    %13 = vsyncpa [#allocation5], 0
    // Predicated region
    $region2: #{tpu_custom_call.1} parent=1 // pred_check
      _
    $region3: #{tpu_custom_call.1} parent=1 // pred_check_branch
      %15 = sbr.rel (0) target = $region5
    $region4: #{tpu_custom_call.1} parent=1 // pred_region
      _
    $region5: #{tpu_custom_call.1} parent=1 // pred_fallthru
      _
    // Predicated region
    $region6: #{tpu_custom_call.1} parent=1 // pred_check
      _
    $region7: #{tpu_custom_call.1} parent=1 // pred_check_branch
      %17 = sbr.rel (0) target = $region9
    $region8: #{tpu_custom_call.1} parent=1 // pred_region
      _
    $region9: #{tpu_custom_call.1} parent=1 // pred_fallthru
      _
    // Predicated region
    $region10: #{tpu_custom_call.1} parent=1 // pred_check
      _
    $region11: #{tpu_custom_call.1} parent=1 // pred_check_branch
      %19 = sbr.rel (0) target = $region13
    $region12: #{tpu_custom_call.1} parent=1 // pred_region
      _
    $region13: #{tpu_custom_call.1} parent=1 // pred_fallthru
      _
    // Predicated region
    $region14: #{tpu_custom_call.1} parent=1 // pred_check
      _
    $region15: #{tpu_custom_call.1} parent=1 // pred_check_branch
      %21 = sbr.rel (0) target = $region17
    $region16: #{tpu_custom_call.1} parent=1 // pred_region
      _
    $region17: #{tpu_custom_call.1} parent=1 // pred_fallthru
      _
    %v23 = vld [vmem:[%s0] sm:$0xf]
    %v24 = vld [vmem:[%s1] sm:$0xf]
    %v25 = vld [vmem:[%s1 + $0x4] sm:$0xf]
    %v28 = vunpack.c.l.b16 %v24
    %v29 = vunpack.c.l.b16 %v25
    %v30 = vpack.c.b16 %v29, %v28
    %vm32 = vcmask 130048
    %v34 = vsel %vm32, %v23, 0
    %36 = vmatprep.subr.bf16.mxu0 0
    %37 = vmatpush1.bf16.msra.mxu0 %v30
    %38 = vmatprep.subr.bf16.mxu0 0
    %39 = vmatpush1.bf16.msra.mxu0 0
    %40 = vmatprep.subr.bf16.mxu0 0
    %41 = vmatpush1.bf16.msra.mxu0 0
    %42 = vmatprep.subr.bf16.mxu0 0
    %43 = vmatpush1.bf16.msra.mxu0 0
    %44 = vmatprep.subr.bf16.mxu0 0
    %45 = vmatpush1.bf16.msra.mxu0 0
    %46 = vmatprep.subr.bf16.mxu0 0
    %47 = vmatpush1.bf16.msra.mxu0 0
    %48 = vmatprep.subr.bf16.mxu0 0
    %49 = vmatpush1.bf16.msra.mxu0 0
    %50 = vmatprep.subr.bf16.mxu0 0
    %51 = vmatpush1.bf16.msra.mxu0 0
    %52 = vmatprep.subr.bf16.mxu0 0
    %53 = vmatpush1.bf16.msra.mxu0 0
    %54 = vmatprep.subr.bf16.mxu0 0
    %55 = vmatpush1.bf16.msra.mxu0 0
    %56 = vmatprep.subr.bf16.mxu0 0
    %57 = vmatpush1.bf16.msra.mxu0 0
    %58 = vmatprep.subr.bf16.mxu0 0
    %59 = vmatpush1.bf16.msra.mxu0 0
    %60 = vmatprep.subr.bf16.mxu0 0
    %61 = vmatpush1.bf16.msra.mxu0 0
    %62 = vmatprep.subr.bf16.mxu0 0
    %63 = vmatpush1.bf16.msra.mxu0 0
    %64 = vmatprep.subr.bf16.mxu0 0
    %65 = vmatpush1.bf16.msra.mxu0 0
    %66 = vmatprep.subr.bf16.mxu0 0
    %67 = vmatpush1.bf16.msra.mxu0 0
    %68 = vmatprep.mubr.bf16.mxu0 0
    %69 = vmatmul.mubr.bf16.gmra.mrb[0].mxu0 %v34
    %v70 = vpop.f32.mrb[0].mxu0
    %v71 = vadd.f32 0.0, %v70
    %v72 = vpop.f32.mrb[0].mxu0
    %v73 = vpop.f32.mrb[0].mxu0
    %v74 = vpop.f32.mrb[0].mxu0
    %75 = vdwg.mxu0
    %v76 = vpack.c.bf16 %v71, %v71
    %vm77 = vcmask 125952
    %78 = vst.msk [vmem:[#allocation2] sm:$0xf] %vm77, %v76
    %v79 = vld [vmem:[%s3] sm:$0xf]
    %v80 = vld [vmem:[%s3 + $0x4] sm:$0xf]
    %v83 = vunpack.c.l.b16 %v79
    %v84 = vunpack.c.l.b16 %v80
    %v85 = vpack.c.b16 %v84, %v83
    %v88 = vsel %vm32, %v76, 0
    %90 = vmatprep.subr.bf16.mxu0 0
    %91 = vmatpush1.bf16.msra.mxu0 %v85
    %92 = vmatprep.subr.bf16.mxu0 0
    %93 = vmatpush1.bf16.msra.mxu0 0
    %94 = vmatprep.subr.bf16.mxu0 0
    %95 = vmatpush1.bf16.msra.mxu0 0
    %96 = vmatprep.subr.bf16.mxu0 0
    %97 = vmatpush1.bf16.msra.mxu0 0
    %98 = vmatprep.subr.bf16.mxu0 0
    %99 = vmatpush1.bf16.msra.mxu0 0
    %100 = vmatprep.subr.bf16.mxu0 0
    %101 = vmatpush1.bf16.msra.mxu0 0
    %102 = vmatprep.subr.bf16.mxu0 0
    %103 = vmatpush1.bf16.msra.mxu0 0
    %104 = vmatprep.subr.bf16.mxu0 0
    %105 = vmatpush1.bf16.msra.mxu0 0
    %106 = vmatprep.subr.bf16.mxu0 0
    %107 = vmatpush1.bf16.msra.mxu0 0
    %108 = vmatprep.subr.bf16.mxu0 0
    %109 = vmatpush1.bf16.msra.mxu0 0
    %110 = vmatprep.subr.bf16.mxu0 0
    %111 = vmatpush1.bf16.msra.mxu0 0
    %112 = vmatprep.subr.bf16.mxu0 0
    %113 = vmatpush1.bf16.msra.mxu0 0
    %114 = vmatprep.subr.bf16.mxu0 0
    %115 = vmatpush1.bf16.msra.mxu0 0
    %116 = vmatprep.subr.bf16.mxu0 0
    %117 = vmatpush1.bf16.msra.mxu0 0
    %118 = vmatprep.subr.bf16.mxu0 0
    %119 = vmatpush1.bf16.msra.mxu0 0
    %120 = vmatprep.subr.bf16.mxu0 0
    %121 = vmatpush1.bf16.msra.mxu0 0
    %122 = vmatprep.mubr.bf16.mxu0 0
    %123 = vmatmul.mubr.bf16.gmra.mrb[0].mxu0 %v88
    %v124 = vpop.f32.mrb[0].mxu0
    %v125 = vadd.f32 0.0, %v124
    %v126 = vpop.f32.mrb[0].mxu0
    %v127 = vpop.f32.mrb[0].mxu0
    %v128 = vpop.f32.mrb[0].mxu0
    %129 = vdwg.mxu0
    %vm130 = vcmask 15360
    %131 = vst.msk [vmem:[%s5] sm:$0xff] %vm130, %v125
    %v132 = vld [vmem:[%s2] sm:$0x1]
    %v134 = vsel %vm32, %v132, 0
    %136 = vmatprep.subr.bf16.mxu0 0
    %137 = vmatpush1.bf16.xpose.msra.mxu0 %v88
    %138 = vmatprep.subr.bf16.mxu0 0
    %139 = vmatpush1.bf16.xpose.msra.mxu0 0
    %140 = vmatprep.subr.bf16.mxu0 0
    %141 = vmatpush1.bf16.xpose.msra.mxu0 0
    %142 = vmatprep.subr.bf16.mxu0 0
    %143 = vmatpush1.bf16.xpose.msra.mxu0 0
    %144 = vmatprep.subr.bf16.mxu0 0
    %145 = vmatpush1.bf16.xpose.msra.mxu0 0
    %146 = vmatprep.subr.bf16.mxu0 0
    %147 = vmatpush1.bf16.xpose.msra.mxu0 0
    %148 = vmatprep.subr.bf16.mxu0 0
    %149 = vmatpush1.bf16.xpose.msra.mxu0 0
    %150 = vmatprep.subr.bf16.mxu0 0
    %151 = vmatpush1.bf16.xpose.msra.mxu0 0
    %152 = vmatprep.subr.bf16.mxu0 0
    %153 = vmatpush1.bf16.xpose.msra.mxu0 0
    %154 = vmatprep.subr.bf16.mxu0 0
    %155 = vmatpush1.bf16.xpose.msra.mxu0 0
    %156 = vmatprep.subr.bf16.mxu0 0
    %157 = vmatpush1.bf16.xpose.msra.mxu0 0
    %158 = vmatprep.subr.bf16.mxu0 0
    %159 = vmatpush1.bf16.xpose.msra.mxu0 0
    %160 = vmatprep.subr.bf16.mxu0 0
    %161 = vmatpush1.bf16.xpose.msra.mxu0 0
    %162 = vmatprep.subr.bf16.mxu0 0
    %163 = vmatpush1.bf16.xpose.msra.mxu0 0
    %164 = vmatprep.subr.bf16.mxu0 0
    %165 = vmatpush1.bf16.xpose.msra.mxu0 0
    %166 = vmatprep.subr.bf16.mxu0 0
    %167 = vmatpush1.bf16.xpose.msra.mxu0 0
    %168 = vmatprep.mubr.bf16.mxu0 0
    %169 = vmatmul.mubr.bf16.gmra.mrb[0].mxu0 %v134
    %v170 = vpop.f32.mrb[0].mxu0
    %v171 = vadd.f32 0.0, %v170
    %v172 = vpop.f32.mrb[0].mxu0
    %v173 = vpop.f32.mrb[0].mxu0
    %v174 = vpop.f32.mrb[0].mxu0
    %175 = vdwg.mxu0
    %vm176 = vcmask 58368
    %177 = vst.msk [vmem:[#allocation4] sm:$0x3] %vm176, %v171
    // Predicated region
    $region18: #{tpu_custom_call.1} parent=1 // pred_check
      _
    $region19: #{tpu_custom_call.1} parent=1 // pred_check_branch
      %179 = sbr.rel (0) target = $region21
    $region20: #{tpu_custom_call.1} parent=1 // pred_region
      %s181 = ssub.s32 64, 64
      %182 = vsyncadd [#allocation3], %s181
      %s184 = sshll.u32 [#allocation2], 4
      %s185 = int_to_ptr.vmem [resolvable:$true] %s184
      %187 = dma.vmem_to_hbm [thread:$0]  %s185, 64, %s4, [#allocation3]
    $region21: #{tpu_custom_call.1} parent=1 // pred_fallthru
      _
    // Predicated region
    $region22: #{tpu_custom_call.1} parent=1 // pred_check
      _
    $region23: #{tpu_custom_call.1} parent=1 // pred_check_branch
      %189 = sbr.rel (0) target = $region25
    $region24: #{tpu_custom_call.1} parent=1 // pred_region
      _
    $region25: #{tpu_custom_call.1} parent=1 // pred_fallthru
      _
    // Predicated region
    $region26: #{tpu_custom_call.1} parent=1 // pred_check
      _
    $region27: #{tpu_custom_call.1} parent=1 // pred_check_branch
      %191 = sbr.rel (0) target = $region29
    $region28: #{tpu_custom_call.1} parent=1 // pred_region
      %s193 = ssub.s32 32, 32
      %194 = vsyncadd [#allocation5], %s193
      %s196 = sshll.u32 [#allocation4], 4
      %s197 = int_to_ptr.vmem [resolvable:$true] %s196
      %199 = dma.vmem_to_hbm [thread:$0]  %s197, 32, %s6, [#allocation5]
    $region29: #{tpu_custom_call.1} parent=1 // pred_fallthru
      _
    // Predicated region
    $region30: #{tpu_custom_call.1} parent=1 // pred_check
      _
    $region31: #{tpu_custom_call.1} parent=1 // pred_check_branch
      %201 = sbr.rel (0) target = $region33
    $region32: #{tpu_custom_call.1} parent=1 // pred_region
      %202 = dma.done [#allocation3], 64
    $region33: #{tpu_custom_call.1} parent=1 // pred_fallthru
      _
    // Predicated region
    $region34: #{tpu_custom_call.1} parent=1 // pred_check
      _
    $region35: #{tpu_custom_call.1} parent=1 // pred_check_branch
      %204 = sbr.rel (0) target = $region37
    $region36: #{tpu_custom_call.1} parent=1 // pred_region
      _
    $region37: #{tpu_custom_call.1} parent=1 // pred_fallthru
      _
    // Predicated region
    $region38: #{tpu_custom_call.1} parent=1 // pred_check
      _
    $region39: #{tpu_custom_call.1} parent=1 // pred_check_branch
      %206 = sbr.rel (0) target = $region41
    $region40: #{tpu_custom_call.1} parent=1 // pred_region
      %207 = dma.done [#allocation5], 32
    $region41: #{tpu_custom_call.1} parent=1 // pred_fallthru
      _
    %208 = vsyncpa [#allocation3], 1
    %209 = vsyncpa [#allocation5], 1

</llo_original>
